<compile_context>
chip_gen: v5e
topology: v5e:2x2
jax: 0.10.0
libtpu: 0.0.40
codegen_flags: <defaults>
</compile_context>

<pallas_src>
import functools

import numpy as np
import jax
import jax.numpy as jnp
from jax.experimental import pallas as pl
from jax.experimental.pallas import tpu as pltpu


def _dino_loss_kernel(inv_ttemp_ref, student_ref, teacher_ref, center_ref,
                      loss_ref, colsum_ref, logp_sum_ref, logp_glob_ref,
                      *, inv_student_temp, ncrops):
    """Grid = (core_split, row_tile, crop); crop is the innermost axis.

    inv_ttemp_ref : (1, 1)          SMEM  1 / teacher_temp (epoch dependent)
    student_ref   : (1, TB, D)      VMEM  crop `v` of the student logits
    teacher_ref   : (2, TB, D)      VMEM  both teacher crops (DMA once / tile)
    center_ref    : (1, D)          VMEM
    loss_ref      : (1, 1, 1)  f32  VMEM  resident per-core partial loss
    colsum_ref    : (1, 1, D)  f32  VMEM  resident per-core partial col sums
    logp_sum_ref  : (TB, D)    f32  VMEM  scratch: sum_v log_softmax(student_v)
    logp_glob_ref : (2, TB, D) f32  VMEM  scratch: logp of the two global crops
    """
    j = pl.program_id(1)          # row tile within this core split
    v = pl.program_id(2)          # student crop
    f32 = jnp.float32
    tile, dim = logp_sum_ref.shape
    ones_col = jnp.ones((dim, 1), f32)   # MXU row-sum vector

    # ---- student crop v: log-softmax.  The softmax denominator rides the MXU
    # (otherwise idle in this kernel), relieving the VALU; max() stays on VPU.
    sv = student_ref[0].astype(f32) * inv_student_temp                # (TB, D)
    sv = sv - jnp.max(sv, axis=-1, keepdims=True)
    z = jnp.dot(jnp.exp(sv), ones_col, preferred_element_type=f32)    # (TB, 1)
    lv = sv - jnp.log(z)

    @pl.when(v == 0)
    def _first_crop():
        logp_sum_ref[...] = lv
        logp_glob_ref[0] = lv

    @pl.when(v > 0)
    def _accumulate_logp():
        logp_sum_ref[...] = logp_sum_ref[...] + lv

    @pl.when(v == 1)
    def _second_crop():
        logp_glob_ref[1] = lv

    # ---- zero the per-core partial accumulators at the first step of each
    # core chunk (resident output blocks: same block index for all (j, v)).
    @pl.when(jnp.logical_and(j == 0, v == ncrops - 1))
    def _init_partials():
        loss_ref[...] = jnp.zeros_like(loss_ref)
        colsum_ref[...] = jnp.zeros_like(colsum_ref)

    # ---- on the last crop of each row tile: teacher softmax cross-entropy
    # (collapsed pair sum) + raw teacher column sums.
    @pl.when(v == ncrops - 1)
    def _teacher_and_accumulate():
        inv_tt = inv_ttemp_ref[0, 0]
        center = center_ref[...].astype(f32)                          # (1, D)
        lp_sum = logp_sum_ref[...]

        ce = jnp.zeros((), f32)
        cs = jnp.zeros((1, dim), f32)
        for iq in range(2):
            t_in = teacher_ref[iq]                                    # (TB, D)
            t_raw = t_in.astype(f32)
            if t_in.dtype.itemsize <= 2:
                # bf16/int8 inputs: the MXU column sum (f32 accumulate) is
                # exact and kills the cross-sublane reduce.
                ones_row = jnp.ones((1, tile), t_in.dtype)
                cs = cs + jnp.dot(ones_row, t_in, preferred_element_type=f32)
            else:
                # f32 inputs: keep the exact sum so the long-lived center EMA
                # buffer is not exposed to MXU input rounding.
                cs = cs + jnp.sum(t_raw, axis=0, keepdims=True)

            t = (t_raw - center) * inv_tt
            t = t - jnp.max(t, axis=-1, keepdims=True)
            te = jnp.exp(t)                                           # (TB, D)
            zt = jnp.dot(te, ones_col, preferred_element_type=f32)    # (TB, 1)
            # Collapsed pair sum: sum_{v != iq} <q, -logp_v> = <q, logp_iq - logp_sum>
            r = jnp.sum(te * (logp_glob_ref[iq] - lp_sum),
                        axis=-1, keepdims=True)                       # (TB, 1)
            ce = ce + jnp.sum(r * pl.reciprocal(zt, approx=False))

        loss_ref[...] = loss_ref[...] + ce
        colsum_ref[...] = colsum_ref[...] + cs[None]


def _vmem_limit_bytes():
    """Generation-aware VMEM limit: ~3/4 of physical capacity (~96 MiB on
    v5e/v6e, ~48 MiB on v7x), conservative fallback if the query fails."""
    try:
        cap = int(pltpu.get_tpu_info().vmem_capacity_bytes)
    except Exception:
        cap = 64 * 1024 * 1024
    return (cap * 3) // 4


def _choose_tile_rows(batch, dim, in_itemsize, vmem_budget):
    """Largest per-crop row tile that (a) divides the per-crop batch, (b) is a
    multiple of the dtype sublane packing (8 f32 / 16 bf16 / 32 int8), and
    (c) keeps the double-buffered inputs + f32 scratch within budget."""
    pack = max(8, 32 // max(1, in_itemsize))

    def est_bytes(t):
        inputs = 2 * (1 + 2) * t * dim * in_itemsize   # 2-deep pipeline
        scratch = 3 * t * dim * 4                      # logp_sum + logp_glob(2)
        work = 6 * t * dim * 4                         # live f32 intermediates
        return inputs + scratch + work

    cands = [t for t in range(pack, batch + 1, pack) if batch % t == 0]
    if not cands:
        return batch                                   # full-block fallback
    for t in sorted(cands, reverse=True):
        if est_bytes(t) <= vmem_budget:
            return t
    return cands[0]


def _dino_loss_forward(student_output, teacher_output, center, inv_teacher_temp,
                       *, ncrops, inv_student_temp, center_momentum,
                       tile_rows=None):
    n_student, dim = student_output.shape
    n_teacher = teacher_output.shape[0]
    batch = n_teacher // 2
    assert ncrops >= 2 and n_teacher == 2 * batch
    assert n_student == ncrops * batch
    assert center.shape == (1, dim)

    # Row-major (ncrops*B, D) -> (ncrops, B, D) is a free, crop-major view.
    student3 = student_output.reshape(ncrops, batch, dim)
    teacher3 = teacher_output.reshape(2, batch, dim)
    inv_tt = jnp.reshape(inv_teacher_temp, (1, 1)).astype(jnp.float32)

    vmem_limit = int(_vmem_limit_bytes())
    if tile_rows is None:
        tile = _choose_tile_rows(batch, dim, student_output.dtype.itemsize,
                                 vmem_budget=int(vmem_limit * 0.8))
    else:
        tile = int(tile_rows)
    assert batch % tile == 0
    n_tiles = batch // tile

    # Leading "parallel" axis: two per-core partials (megacore on v7x; just two
    # sequential chunks on single-TC v5e/v6e).
    n_splits = 2 if (n_tiles >= 2 and n_tiles % 2 == 0) else 1
    tiles_per_split = n_tiles // n_splits

    def row(c, j):
        return c * tiles_per_split + j

    kernel = functools.partial(
        _dino_loss_kernel,
        inv_student_temp=float(inv_student_temp),
        ncrops=ncrops)

    grid_spec = pltpu.PrefetchScalarGridSpec(
        num_scalar_prefetch=0,
        grid=(n_splits, tiles_per_split, ncrops),
        in_specs=[
            pl.BlockSpec((1, 1), lambda c, j, v: (0, 0),
                         memory_space=pltpu.MemorySpace.SMEM),
            pl.BlockSpec((1, tile, dim), lambda c, j, v: (v, row(c, j), 0)),
            # Constant along the crop axis -> teacher DMAs once per row tile.
            pl.BlockSpec((2, tile, dim), lambda c, j, v: (0, row(c, j), 0)),
            pl.BlockSpec((1, dim), lambda c, j, v: (0, 0)),
        ],
        out_specs=(
            pl.BlockSpec((1, 1, 1), lambda c, j, v: (c, 0, 0)),
            pl.BlockSpec((1, 1, dim), lambda c, j, v: (c, 0, 0)),
        ),
        scratch_shapes=[
            pltpu.VMEM((tile, dim), jnp.float32),       # logp_sum
            pltpu.VMEM((2, tile, dim), jnp.float32),    # logp of global crops
        ],
    )

    loss_part, colsum_part = pl.pallas_call(
        kernel,
        grid_spec=grid_spec,
        out_shape=(jax.ShapeDtypeStruct((n_splits, 1, 1), jnp.float32),
                   jax.ShapeDtypeStruct((n_splits, 1, dim), jnp.float32)),
        compiler_params=pltpu.CompilerParams(
            dimension_semantics=("parallel", "arbitrary", "arbitrary"),
            vmem_limit_bytes=vmem_limit),
    )(inv_tt, student3, teacher3, center)

    # TODO(synk): multi-device data parallel needs a psum of loss_part and
    # colsum_part (and global-batch denominators) here, before the EMA.
    n_terms = 2 * (ncrops - 1)
    loss = jnp.sum(loss_part) / (n_terms * batch)
    col_sum = jnp.sum(colsum_part, axis=0)                           # (1, dim)
    new_center = (center * center_momentum
                  + col_sum * ((1.0 - center_momentum) / (2.0 * batch)))
    return loss, new_center


class DINOLoss:
    """JAX/Pallas port of the PyTorch DINOLoss forward + center EMA."""

    def __init__(self, out_dim, ncrops, warmup_teacher_temp, teacher_temp,
                 warmup_teacher_temp_epochs, nepochs,
                 student_temp=0.1, center_momentum=0.9, tile_rows=None):
        self.student_temp = student_temp
        self.center_momentum = center_momentum
        self.ncrops = ncrops
        self.out_dim = out_dim
        self.center = jnp.zeros((1, out_dim), jnp.float32)   # registered buffer
        self.teacher_temp_schedule = np.concatenate((
            np.linspace(warmup_teacher_temp, teacher_temp,
                        warmup_teacher_temp_epochs),
            np.ones(nepochs - warmup_teacher_temp_epochs) * teacher_temp))
        # jit once; the epoch-dependent teacher temperature is a runtime SMEM
        # scalar, so the warmup schedule never triggers a recompile.
        self._forward = jax.jit(functools.partial(
            _dino_loss_forward,
            ncrops=ncrops,
            inv_student_temp=1.0 / student_temp,
            center_momentum=center_momentum,
            tile_rows=tile_rows))

    def __call__(self, student_output, teacher_output, epoch):
        inv_ttemp = jnp.float32(1.0 / float(self.teacher_temp_schedule[epoch]))
        loss, new_center = self._forward(student_output, teacher_output,
                                         self.center, inv_ttemp)
        # Stateful buffer update (eager usage; under an outer jit/scan, thread
        # the center explicitly instead of mutating the attribute).
        self.center = new_center
        return loss


def _reference(student_output, teacher_output, center, epoch, ncrops,
               student_temp, schedule, momentum):
    """Pure-JAX reference mirroring the PyTorch module."""
    batch = teacher_output.shape[0] // 2
    temp = float(schedule[epoch])
    student_out = student_output / student_temp
    teacher_out = jax.nn.softmax((teacher_output - center) / temp, axis=-1)
    s_chunks = [student_out[v * batch:(v + 1) * batch] for v in range(ncrops)]
    t_chunks = [teacher_out[i * batch:(i + 1) * batch] for i in range(2)]
    total, n = 0.0, 0
    for iq, q in enumerate(t_chunks):
        for v in range(ncrops):
            if v == iq:
                continue
            loss = jnp.sum(-q * jax.nn.log_softmax(s_chunks[v], axis=-1), axis=-1)
            total = total + jnp.mean(loss)
            n += 1
    total = total / n
    batch_center = (jnp.sum(teacher_output, axis=0, keepdims=True)
                    / teacher_output.shape[0])
    new_center = center * momentum + batch_center * (1 - momentum)
    return total, new_center


if __name__ == "__main__":
    out_dim = 256
    ncrops = 4
    B = 32            # per-crop batch

    # tile_rows=8 forces 4 row tiles -> exercises the 2-way core split, the
    # resident accumulators and the crop grid axis even at this small size.
    dino = DINOLoss(out_dim=out_dim, ncrops=ncrops,
                    warmup_teacher_temp=0.04, teacher_temp=0.07,
                    warmup_teacher_temp_epochs=3, nepochs=10,
                    tile_rows=8)

    key = jax.random.PRNGKey(0)
    k1, k2, k3, k4 = jax.random.split(key, 4)
    student1 = jax.random.normal(k1, (ncrops * B, out_dim), jnp.float32)
    teacher1 = jax.random.normal(k2, (2 * B, out_dim), jnp.float32)
    student2 = jax.random.normal(k3, (ncrops * B, out_dim), jnp.float32)
    teacher2 = jax.random.normal(k4, (2 * B, out_dim), jnp.float32)

    # Independent pure-JAX reference chain (two epochs, different temps).
    ref_center0 = jnp.zeros((1, out_dim), jnp.float32)
    ref_loss1, ref_center1 = _reference(student1, teacher1, ref_center0, 1,
                                        ncrops, dino.student_temp,
                                        dino.teacher_temp_schedule,
                                        dino.center_momentum)
    ref_loss2, ref_center2 = _reference(student2, teacher2, ref_center1, 2,
                                        ncrops, dino.student_temp,
                                        dino.teacher_temp_schedule,
                                        dino.center_momentum)

    loss1 = dino(student1, teacher1, epoch=1)
    loss2 = dino(student2, teacher2, epoch=2)   # new temp, no recompile
    jax.block_until_ready(loss2)
    jax.block_until_ready(dino.center)

    # The loss-path softmax denominators ride the MXU at default matmul
    # precision (possible bf16 input rounding for f32 operands), hence the
    # relative 1e-2 tolerance; the center path is exact f32 arithmetic.
    assert np.allclose(np.asarray(loss1), np.asarray(ref_loss1),
                       rtol=1e-2, atol=1e-2)
    assert np.allclose(np.asarray(loss2), np.asarray(ref_loss2),
                       rtol=1e-2, atol=1e-2)
    assert np.allclose(np.asarray(dino.center), np.asarray(ref_center2),
                       rtol=1e-5, atol=1e-6)
    print("KERNEL_OK")
</pallas_src>

<mosaic_0001>
module attributes {stable_mosaic.version = 11 : i64} {
  func.func @_dino_loss_kernel(%arg0: i32, %arg1: i32, %arg2: i32, %arg3: memref<1x1xf32, #tpu.memory_space<smem>>, %arg4: memref<1x8x256xf32, #tpu.memory_space<vmem>>, %arg5: memref<2x8x256xf32, #tpu.memory_space<vmem>>, %arg6: memref<1x256xf32, #tpu.memory_space<vmem>>, %arg7: memref<1x1x1xf32, #tpu.memory_space<vmem>>, %arg8: memref<1x1x256xf32, #tpu.memory_space<vmem>>, %arg9: memref<8x256xf32, #tpu.memory_space<vmem>>, %arg10: memref<2x8x256xf32, #tpu.memory_space<vmem>>) attributes {dimension_semantics = [#tpu.dimension_semantics<parallel>, #tpu.dimension_semantics<arbitrary>, #tpu.dimension_semantics<arbitrary>], iteration_bounds = array<i64: 2, 2, 4>, scalar_prefetch = 0 : i64, scratch_operands = 2 : i64, tpu.core_type = #tpu.core_type<tc>, window_params = [{transform_indices = @transform_0, window_bounds = array<i64: 1, 1>}, {transform_indices = @transform_1, window_bounds = array<i64: 1, 8, 256>}, {transform_indices = @transform_2, window_bounds = array<i64: 2, 8, 256>}, {pipeline_mode = #tpu.pipeline_mode<synchronous>, transform_indices = @transform_3, window_bounds = array<i64: 1, 256>}, {transform_indices = @transform_4, window_bounds = array<i64: 1, 1, 1>}, {transform_indices = @transform_5, window_bounds = array<i64: 1, 1, 256>}]} {
    %cst = arith.constant 1.000000e+00 : f32
    %0 = vector.broadcast %cst : f32 to vector<256x1xf32>
    %c0 = arith.constant 0 : index
    %c0_0 = arith.constant 0 : index
    %c0_1 = arith.constant 0 : index
    %1 = vector.load %arg4[%c0, %c0_0, %c0_1] : memref<1x8x256xf32, #tpu.memory_space<vmem>>, vector<1x8x256xf32>
    %2 = vector.shape_cast %1 : vector<1x8x256xf32> to vector<8x256xf32>
    %cst_2 = arith.constant 1.000000e+01 : f32
    %3 = vector.broadcast %cst_2 : f32 to vector<8x256xf32>
    %4 = arith.mulf %2, %3 : vector<8x256xf32>
    %cst_3 = arith.constant dense<0xFF800000> : vector<8xf32>
    %5 = vector.multi_reduction <maximumf>, %4, %cst_3 [1] : vector<8x256xf32> to vector<8xf32>
    %6 = vector.shape_cast %5 : vector<8xf32> to vector<8x1xf32>
    %7 = vector.broadcast %6 : vector<8x1xf32> to vector<8x256xf32>
    %8 = arith.subf %4, %7 : vector<8x256xf32>
    %9 = math.exp %8 : vector<8x256xf32>
    %cst_4 = arith.constant dense<0.000000e+00> : vector<8x1xf32>
    %10 = tpu.matmul %9, %0, %cst_4 {dimension_numbers = #tpu.dot_dimension_numbers<[1], [0], [0], [1], [0, 0, 1, 1], [], []>} : vector<8x256xf32>, vector<256x1xf32>, vector<8x1xf32> -> vector<8x1xf32>
    %11 = math.log %10 : vector<8x1xf32>
    %12 = vector.broadcast %11 : vector<8x1xf32> to vector<8x256xf32>
    %13 = arith.subf %8, %12 : vector<8x256xf32>
    %c0_i32 = arith.constant 0 : i32
    %14 = arith.cmpi eq, %arg2, %c0_i32 : i32
    %15 = arith.extui %14 : i1 to i32
    %c0_i32_5 = arith.constant 0 : i32
    %16 = arith.cmpi ne, %15, %c0_i32_5 : i32
    scf.if %16 {
      %c0_13 = arith.constant 0 : index
      %c0_14 = arith.constant 0 : index
      %31 = vector.load %arg9[%c0_13, %c0_14] : memref<8x256xf32, #tpu.memory_space<vmem>>, vector<8x256xf32>
      tpu.vector_store %arg9[%c0_13, %c0_14], %13 {strides = array<i32>} : memref<8x256xf32, #tpu.memory_space<vmem>>, vector<8x256xf32>,
      %c0_15 = arith.constant 0 : index
      %c0_16 = arith.constant 0 : index
      %c0_17 = arith.constant 0 : index
      %32 = vector.load %arg10[%c0_15, %c0_16, %c0_17] : memref<2x8x256xf32, #tpu.memory_space<vmem>>, vector<1x8x256xf32>
      %33 = vector.shape_cast %32 : vector<1x8x256xf32> to vector<8x256xf32>
      %34 = vector.shape_cast %13 : vector<8x256xf32> to vector<1x8x256xf32>
      tpu.vector_store %arg10[%c0_15, %c0_16, %c0_17], %34 {strides = array<i32>} : memref<2x8x256xf32, #tpu.memory_space<vmem>>, vector<1x8x256xf32>,
    } else {
    }
    %c0_i32_6 = arith.constant 0 : i32
    %17 = arith.cmpi sgt, %arg2, %c0_i32_6 : i32
    %18 = arith.extui %17 : i1 to i32
    %c0_i32_7 = arith.constant 0 : i32
    %19 = arith.cmpi ne, %18, %c0_i32_7 : i32
    scf.if %19 {
      %c0_13 = arith.constant 0 : index
      %c0_14 = arith.constant 0 : index
      %31 = vector.load %arg9[%c0_13, %c0_14] : memref<8x256xf32, #tpu.memory_space<vmem>>, vector<8x256xf32>
      %32 = arith.addf %31, %13 : vector<8x256xf32>
      %c0_15 = arith.constant 0 : index
      %c0_16 = arith.constant 0 : index
      %33 = vector.load %arg9[%c0_15, %c0_16] : memref<8x256xf32, #tpu.memory_space<vmem>>, vector<8x256xf32>
      tpu.vector_store %arg9[%c0_15, %c0_16], %32 {strides = array<i32>} : memref<8x256xf32, #tpu.memory_space<vmem>>, vector<8x256xf32>,
    } else {
    }
    %c1_i32 = arith.constant 1 : i32
    %20 = arith.cmpi eq, %arg2, %c1_i32 : i32
    %21 = arith.extui %20 : i1 to i32
    %c0_i32_8 = arith.constant 0 : i32
    %22 = arith.cmpi ne, %21, %c0_i32_8 : i32
    scf.if %22 {
      %c1 = arith.constant 1 : index
      %c0_13 = arith.constant 0 : index
      %c0_14 = arith.constant 0 : index
      %31 = vector.load %arg10[%c1, %c0_13, %c0_14] : memref<2x8x256xf32, #tpu.memory_space<vmem>>, vector<1x8x256xf32>
      %32 = vector.shape_cast %31 : vector<1x8x256xf32> to vector<8x256xf32>
      %33 = vector.shape_cast %13 : vector<8x256xf32> to vector<1x8x256xf32>
      tpu.vector_store %arg10[%c1, %c0_13, %c0_14], %33 {strides = array<i32>} : memref<2x8x256xf32, #tpu.memory_space<vmem>>, vector<1x8x256xf32>,
    } else {
    }
    %c0_i32_9 = arith.constant 0 : i32
    %23 = arith.cmpi eq, %arg1, %c0_i32_9 : i32
    %c3_i32 = arith.constant 3 : i32
    %24 = arith.cmpi eq, %arg2, %c3_i32 : i32
    %25 = arith.andi %23, %24 : i1
    %26 = arith.extui %25 : i1 to i32
    %c0_i32_10 = arith.constant 0 : i32
    %27 = arith.cmpi ne, %26, %c0_i32_10 : i32
    scf.if %27 {
      %cst_13 = arith.constant 0.000000e+00 : f32
      %31 = vector.broadcast %cst_13 : f32 to vector<1x1x1xf32>
      %c0_14 = arith.constant 0 : index
      %c0_15 = arith.constant 0 : index
      %c0_16 = arith.constant 0 : index
      %32 = vector.load %arg7[%c0_14, %c0_15, %c0_16] : memref<1x1x1xf32, #tpu.memory_space<vmem>>, vector<1x1x1xf32>
      tpu.vector_store %arg7[%c0_14, %c0_15, %c0_16], %31 {strides = array<i32>} : memref<1x1x1xf32, #tpu.memory_space<vmem>>, vector<1x1x1xf32>,
      %cst_17 = arith.constant 0.000000e+00 : f32
      %33 = vector.broadcast %cst_17 : f32 to vector<1x1x256xf32>
      %c0_18 = arith.constant 0 : index
      %c0_19 = arith.constant 0 : index
      %c0_20 = arith.constant 0 : index
      %34 = vector.load %arg8[%c0_18, %c0_19, %c0_20] : memref<1x1x256xf32, #tpu.memory_space<vmem>>, vector<1x1x256xf32>
      tpu.vector_store %arg8[%c0_18, %c0_19, %c0_20], %33 {strides = array<i32>} : memref<1x1x256xf32, #tpu.memory_space<vmem>>, vector<1x1x256xf32>,
    } else {
    }
    %c3_i32_11 = arith.constant 3 : i32
    %28 = arith.cmpi eq, %arg2, %c3_i32_11 : i32
    %29 = arith.extui %28 : i1 to i32
    %c0_i32_12 = arith.constant 0 : i32
    %30 = arith.cmpi ne, %29, %c0_i32_12 : i32
    scf.if %30 {
      %c0_13 = arith.constant 0 : index
      %c0_14 = arith.constant 0 : index
      %31 = memref.load %arg3[%c0_13, %c0_14] : memref<1x1xf32, #tpu.memory_space<smem>>
      %c0_15 = arith.constant 0 : index
      %c0_16 = arith.constant 0 : index
      %32 = vector.load %arg6[%c0_15, %c0_16] : memref<1x256xf32, #tpu.memory_space<vmem>>, vector<1x256xf32>
      %c0_17 = arith.constant 0 : index
      %c0_18 = arith.constant 0 : index
      %33 = vector.load %arg9[%c0_17, %c0_18] : memref<8x256xf32, #tpu.memory_space<vmem>>, vector<8x256xf32>
      %cst_19 = arith.constant 0.000000e+00 : f32
      %34 = vector.broadcast %cst_19 : f32 to vector<1x256xf32>
      %c0_20 = arith.constant 0 : index
      %c0_21 = arith.constant 0 : index
      %c0_22 = arith.constant 0 : index
      %35 = vector.load %arg5[%c0_20, %c0_21, %c0_22] : memref<2x8x256xf32, #tpu.memory_space<vmem>>, vector<1x8x256xf32>
      %36 = vector.shape_cast %35 : vector<1x8x256xf32> to vector<8x256xf32>
      %cst_23 = arith.constant dense<0.000000e+00> : vector<256xf32>
      %37 = vector.multi_reduction <add>, %36, %cst_23 [0] : vector<8x256xf32> to vector<256xf32>
      %38 = vector.shape_cast %37 : vector<256xf32> to vector<1x256xf32>
      %39 = arith.addf %34, %38 : vector<1x256xf32>
      %40 = vector.broadcast %32 : vector<1x256xf32> to vector<8x256xf32>
      %41 = arith.subf %36, %40 : vector<8x256xf32>
      %42 = vector.broadcast %31 : f32 to vector<8x256xf32>
      %43 = arith.mulf %41, %42 : vector<8x256xf32>
      %cst_24 = arith.constant dense<0xFF800000> : vector<8xf32>
      %44 = vector.multi_reduction <maximumf>, %43, %cst_24 [1] : vector<8x256xf32> to vector<8xf32>
      %45 = vector.shape_cast %44 : vector<8xf32> to vector<8x1xf32>
      %46 = vector.broadcast %45 : vector<8x1xf32> to vector<8x256xf32>
      %47 = arith.subf %43, %46 : vector<8x256xf32>
      %48 = math.exp %47 : vector<8x256xf32>
      %cst_25 = arith.constant dense<0.000000e+00> : vector<8x1xf32>
      %49 = tpu.matmul %48, %0, %cst_25 {dimension_numbers = #tpu.dot_dimension_numbers<[1], [0], [0], [1], [0, 0, 1, 1], [], []>} : vector<8x256xf32>, vector<256x1xf32>, vector<8x1xf32> -> vector<8x1xf32>
      %c0_26 = arith.constant 0 : index
      %c0_27 = arith.constant 0 : index
      %c0_28 = arith.constant 0 : index
      %50 = vector.load %arg10[%c0_26, %c0_27, %c0_28] : memref<2x8x256xf32, #tpu.memory_space<vmem>>, vector<1x8x256xf32>
      %51 = vector.shape_cast %50 : vector<1x8x256xf32> to vector<8x256xf32>
      %52 = arith.subf %51, %33 : vector<8x256xf32>
      %53 = arith.mulf %48, %52 : vector<8x256xf32>
      %cst_29 = arith.constant dense<0.000000e+00> : vector<8xf32>
      %54 = vector.multi_reduction <add>, %53, %cst_29 [1] : vector<8x256xf32> to vector<8xf32>
      %55 = vector.shape_cast %54 : vector<8xf32> to vector<8x1xf32>
      %56 = tpu.reciprocal %49 : vector<8x1xf32> -> vector<8x1xf32>
      %57 = arith.mulf %55, %56 : vector<8x1xf32>
      %58 = vector.shape_cast %57 : vector<8x1xf32> to vector<1x8x1xf32>
      %cst_30 = arith.constant dense<0.000000e+00> : vector<1xf32>
      %59 = vector.multi_reduction <add>, %58, %cst_30 [1, 2] : vector<1x8x1xf32> to vector<1xf32>
      %60 = vector.shape_cast %59 : vector<1xf32> to vector<1x1x1xf32>
      %61 = vector.extract %60[0, 0, 0] : f32 from vector<1x1x1xf32>
      %cst_31 = arith.constant 0.000000e+00 : f32
      %62 = arith.addf %cst_31, %61 : f32
      %c1 = arith.constant 1 : index
      %c0_32 = arith.constant 0 : index
      %c0_33 = arith.constant 0 : index
      %63 = vector.load %arg5[%c1, %c0_32, %c0_33] : memref<2x8x256xf32, #tpu.memory_space<vmem>>, vector<1x8x256xf32>
      %64 = vector.shape_cast %63 : vector<1x8x256xf32> to vector<8x256xf32>
      %cst_34 = arith.constant dense<0.000000e+00> : vector<256xf32>
      %65 = vector.multi_reduction <add>, %64, %cst_34 [0] : vector<8x256xf32> to vector<256xf32>
      %66 = vector.shape_cast %65 : vector<256xf32> to vector<1x256xf32>
      %67 = arith.addf %39, %66 : vector<1x256xf32>
      %68 = vector.broadcast %32 : vector<1x256xf32> to vector<8x256xf32>
      %69 = arith.subf %64, %68 : vector<8x256xf32>
      %70 = vector.broadcast %31 : f32 to vector<8x256xf32>
      %71 = arith.mulf %69, %70 : vector<8x256xf32>
      %cst_35 = arith.constant dense<0xFF800000> : vector<8xf32>
      %72 = vector.multi_reduction <maximumf>, %71, %cst_35 [1] : vector<8x256xf32> to vector<8xf32>
      %73 = vector.shape_cast %72 : vector<8xf32> to vector<8x1xf32>
      %74 = vector.broadcast %73 : vector<8x1xf32> to vector<8x256xf32>
      %75 = arith.subf %71, %74 : vector<8x256xf32>
      %76 = math.exp %75 : vector<8x256xf32>
      %cst_36 = arith.constant dense<0.000000e+00> : vector<8x1xf32>
      %77 = tpu.matmul %76, %0, %cst_36 {dimension_numbers = #tpu.dot_dimension_numbers<[1], [0], [0], [1], [0, 0, 1, 1], [], []>} : vector<8x256xf32>, vector<256x1xf32>, vector<8x1xf32> -> vector<8x1xf32>
      %c1_37 = arith.constant 1 : index
      %c0_38 = arith.constant 0 : index
      %c0_39 = arith.constant 0 : index
      %78 = vector.load %arg10[%c1_37, %c0_38, %c0_39] : memref<2x8x256xf32, #tpu.memory_space<vmem>>, vector<1x8x256xf32>
      %79 = vector.shape_cast %78 : vector<1x8x256xf32> to vector<8x256xf32>
      %80 = arith.subf %79, %33 : vector<8x256xf32>
      %81 = arith.mulf %76, %80 : vector<8x256xf32>
      %cst_40 = arith.constant dense<0.000000e+00> : vector<8xf32>
      %82 = vector.multi_reduction <add>, %81, %cst_40 [1] : vector<8x256xf32> to vector<8xf32>
      %83 = vector.shape_cast %82 : vector<8xf32> to vector<8x1xf32>
      %84 = tpu.reciprocal %77 : vector<8x1xf32> -> vector<8x1xf32>
      %85 = arith.mulf %83, %84 : vector<8x1xf32>
      %86 = vector.shape_cast %85 : vector<8x1xf32> to vector<1x8x1xf32>
      %cst_41 = arith.constant dense<0.000000e+00> : vector<1xf32>
      %87 = vector.multi_reduction <add>, %86, %cst_41 [1, 2] : vector<1x8x1xf32> to vector<1xf32>
      %88 = vector.shape_cast %87 : vector<1xf32> to vector<1x1x1xf32>
      %89 = vector.extract %88[0, 0, 0] : f32 from vector<1x1x1xf32>
      %90 = arith.addf %62, %89 : f32
      %c0_42 = arith.constant 0 : index
      %c0_43 = arith.constant 0 : index
      %c0_44 = arith.constant 0 : index
      %91 = vector.load %arg7[%c0_42, %c0_43, %c0_44] : memref<1x1x1xf32, #tpu.memory_space<vmem>>, vector<1x1x1xf32>
      %92 = vector.broadcast %90 : f32 to vector<1x1x1xf32>
      %93 = arith.addf %91, %92 : vector<1x1x1xf32>
      %c0_45 = arith.constant 0 : index
      %c0_46 = arith.constant 0 : index
      %c0_47 = arith.constant 0 : index
      %94 = vector.load %arg7[%c0_45, %c0_46, %c0_47] : memref<1x1x1xf32, #tpu.memory_space<vmem>>, vector<1x1x1xf32>
      tpu.vector_store %arg7[%c0_45, %c0_46, %c0_47], %93 {strides = array<i32>} : memref<1x1x1xf32, #tpu.memory_space<vmem>>, vector<1x1x1xf32>,
      %c0_48 = arith.constant 0 : index
      %c0_49 = arith.constant 0 : index
      %c0_50 = arith.constant 0 : index
      %95 = vector.load %arg8[%c0_48, %c0_49, %c0_50] : memref<1x1x256xf32, #tpu.memory_space<vmem>>, vector<1x1x256xf32>
      %96 = vector.shape_cast %67 : vector<1x256xf32> to vector<1x1x256xf32>
      %97 = arith.addf %95, %96 : vector<1x1x256xf32>
      %c0_51 = arith.constant 0 : index
      %c0_52 = arith.constant 0 : index
      %c0_53 = arith.constant 0 : index
      %98 = vector.load %arg8[%c0_51, %c0_52, %c0_53] : memref<1x1x256xf32, #tpu.memory_space<vmem>>, vector<1x1x256xf32>
      tpu.vector_store %arg8[%c0_51, %c0_52, %c0_53], %97 {strides = array<i32>} : memref<1x1x256xf32, #tpu.memory_space<vmem>>, vector<1x1x256xf32>,
    } else {
    }
    return
  }
  func.func @transform_0(%arg0: i32, %arg1: i32, %arg2: i32) -> (i32, i32) {
    %c0_i32 = arith.constant 0 : i32
    %c0_i32_0 = arith.constant 0 : i32
    %c0_i32_1 = arith.constant 0 : i32
    return %c0_i32, %c0_i32_0 : i32, i32
  }
  func.func @transform_1(%arg0: i32, %arg1: i32, %arg2: i32) -> (i32, i32, i32) {
    %c2_i32 = arith.constant 2 : i32
    %0 = arith.muli %arg0, %c2_i32 : i32
    %1 = arith.addi %0, %arg1 : i32
    %c0_i32 = arith.constant 0 : i32
    %c0_i32_0 = arith.constant 0 : i32
    return %arg2, %1, %c0_i32 : i32, i32, i32
  }
  func.func @transform_2(%arg0: i32, %arg1: i32, %arg2: i32) -> (i32, i32, i32) {
    %c2_i32 = arith.constant 2 : i32
    %0 = arith.muli %arg0, %c2_i32 : i32
    %1 = arith.addi %0, %arg1 : i32
    %c0_i32 = arith.constant 0 : i32
    %c0_i32_0 = arith.constant 0 : i32
    %c0_i32_1 = arith.constant 0 : i32
    return %c0_i32, %1, %c0_i32_0 : i32, i32, i32
  }
  func.func @transform_3(%arg0: i32, %arg1: i32, %arg2: i32) -> (i32, i32) {
    %c0_i32 = arith.constant 0 : i32
    %c0_i32_0 = arith.constant 0 : i32
    %c0_i32_1 = arith.constant 0 : i32
    return %c0_i32, %c0_i32_0 : i32, i32
  }
  func.func @transform_4(%arg0: i32, %arg1: i32, %arg2: i32) -> (i32, i32, i32) {
    %c0_i32 = arith.constant 0 : i32
    %c0_i32_0 = arith.constant 0 : i32
    %c0_i32_1 = arith.constant 0 : i32
    return %arg0, %c0_i32, %c0_i32_0 : i32, i32, i32
  }
  func.func @transform_5(%arg0: i32, %arg1: i32, %arg2: i32) -> (i32, i32, i32) {
    %c0_i32 = arith.constant 0 : i32
    %c0_i32_0 = arith.constant 0 : i32
    %c0_i32_1 = arith.constant 0 : i32
    return %arg0, %c0_i32, %c0_i32_0 : i32, i32, i32
  }
}

</mosaic_0001>

<llo_original>
// kernel: _dino_loss_forward.1
$region0: #{_dino_loss_forward.1}
  #allocation0 [shape = 'u32[]', space=smem, size = 0x4, offset = 0x4, fixed_abs, tag = 'smem constant byte address 0x4 - core index']
  #allocation1 [shape = 'u32[72,128]{1,0:T(1,128)}', space=vmem, size = 0x9000, scoped, tag = 'internal scratch']
  #allocation2 [shape = 'f32[8,256]{1,0:T(8,128)}', space=vmem, size = 0x2000, scoped, tag = 'scratch operand']
  #allocation3 [shape = 'f32[2,8,256]{2,1,0:T(8,128)}', space=vmem, size = 0x4000, scoped, tag = 'scratch operand']
  #allocation4 [shape = 'f32[1,1]{1,0:T(1,128)S(6)}', space=smem, size = 0x200, scoped, tag = 'scoped memory for _dino_loss_forward.1']
  %s0 = inlined_call_operand.<no memory space> [shape: f32[1,1], index: 0, kind: input, shape index: {}]
  %s1 = inlined_call_operand.hbm [shape: f32[4,32,256], index: 1, kind: input, shape index: {}]
  %s2 = inlined_call_operand.hbm [shape: f32[2,32,256], index: 2, kind: input, shape index: {}]
  %s3 = inlined_call_operand.vmem [shape: f32[1,256], index: 3, kind: input, shape index: {}]
  %s4 = inlined_call_operand.vmem [shape: f32[2,1,1], index: 4, kind: output, shape index: {0}]
  %s5 = inlined_call_operand.vmem [shape: f32[2,1,256], index: 5, kind: output, shape index: {1}]
  %6 = xla_tuple %s4, %s5
  %s7 = sld [smem:[#allocation0]]
  $region85: #{_dino_loss_forward.1} parent=0
    _
  %s9 = ssub.s32 1, %s7
  %s10 = scalar_select 0, %s9, %s7
  %11 = sst [smem:[#allocation4]] %s0
  $region1: #{_dino_loss_forward.1} parent=0
    #allocation5 [shape = 'u8[16384]{0}', space=vmem, size = 0x4000, scoped, tag = 'input window, operand 1']
    #allocation6 [shape = 's32[2]{0}', space=sflag, size = 0x8, scoped, tag = 'scoped memory for _dino_loss_forward.1']
    #allocation7 [shape = 'u8[32768]{0}', space=vmem, size = 0x8000, scoped, tag = 'input window, operand 2']
    #allocation8 [shape = 's32[2]{0}', space=sflag, size = 0x8, scoped, tag = 'scoped memory for _dino_loss_forward.1']
    %12 = vsyncpa [#allocation6], 0
    %s13 = scalar_lea.sflag [#allocation6], 1
    %14 = vsyncpa %s13, 0
    %15 = vsyncpa [#allocation8], 0
    %s16 = scalar_lea.sflag [#allocation8], 1
    %17 = vsyncpa %s16, 0
    loop: start=0, step=1, limit=18
    $region2: #{_dino_loss_forward.1} parent=1 // loop_pre_header
      _
    $region3: #{_dino_loss_forward.1} parent=1 // loop_header
      %s19 = sphi 0, %s23
      %p20 = scmp.ge.s32.totalorder %s19, 18
      %s26 = sphi 0, %s45
      %s27 = sphi 0, %s41
      %s28 = sphi 0, %s37
      %s29 = sphi 0, %s26
      %s30 = sphi 0, %s27
      %s31 = sphi 0, %s28
      %s32 = sphi 0, %s29
      %s33 = sphi 0, %s30
      %s34 = sphi 0, %s31
      %s46 = sphi 0, %s46
      %s48 = sphi 0, %s46
      %s49 = sphi 0, %s48
      %s63 = sphi 0, %s49
      %s75 = sphi 0, %s77
      %s78 = sphi 0, %s75
      %s79 = sphi 0, %s78
      %s95 = sphi 0, %s79
      %s105 = sphi 0, %s107
      %s108 = sphi 0, %s105
      %s109 = sphi 0, %s108
      %s125 = sphi 0, %s109
      %s129 = sphi 0, %s129
      %s131 = sphi 0, %s129
      %s132 = sphi 0, %s131
      %s146 = sphi 0, %s132
      %s152 = sphi 0, %s154
      %s155 = sphi 0, %s152
      %s156 = sphi 0, %s155
      %s172 = sphi 0, %s156
      %s178 = sphi 0, %s180
      %s181 = sphi 0, %s178
      %s182 = sphi 0, %s181
      %s198 = sphi 0, %s182
    $region4: #{_dino_loss_forward.1} parent=1 // loop_header_branch
      %22 = sbr.rel (%p20) target = $region8
    $region5: #{_dino_loss_forward.1} parent=1 // loop_body
      %s24 = ssub.s32 %s19, 1
      %s25 = ssub.s32 %s19, 2
      %s35 = sadd.s32 1, %s28
      %p36 = scmp.ge.s32.totalorder %s35, 4
      %s37 = scalar_select %p36, 0, %s35
      %s38 = sadd.s32 1, %s27
      %s39 = scalar_select %p36, %s38, %s27
      %p40 = scmp.ge.s32.totalorder %s39, 2
      %s41 = scalar_select %p40, 0, %s39
      %s42 = sadd.s32 1, %s26
      %s43 = scalar_select %p40, %s42, %s26
      %p44 = scmp.ge.s32.totalorder %s43, 2
      %s45 = scalar_select %p44, 0, %s43
      %s47 = sadd.s32 %s46, 1
      %p50 = scmp.eq.s32.totalorder %s19, 15
      %p51 = scmp.ne.s32.totalorder %s46, %s48
      %p52 = scmp.eq.s32.totalorder %s19, 0
      %p53 = por %p51, %p52
      %p54 = scmp.ne.s32.totalorder %s46, %s48
      %p55 = scmp.eq.s32.totalorder %s24, 15
      %p56 = por %p54, %p55
      %p57 = scmp.ne.s32.totalorder %s48, %s49
      %p58 = scmp.eq.s32.totalorder %s24, 0
      %p59 = por %p57, %p58
      %p60 = scmp.ne.s32.totalorder %s48, %s49
      %p61 = scmp.eq.s32.totalorder %s25, 15
      %p62 = por %p60, %p61
      %p64 = scmp.ne.s32.totalorder %s49, %s63
      %p65 = scmp.eq.s32.totalorder %s25, 0
      %p66 = por %p64, %p65
      %s67 = smul.u32 %s26, 2
      %s68 = sadd.s32 %s67, %s27
      %s69 = smul.u32 %s45, 2
      %s70 = sadd.s32 %s69, %s41
      %s71 = ssub.s32 %s28, %s37
      %s72 = ssub.s32 %s68, %s70
      %s73 = sor.u32 %s71, %s72
      %p74 = scmp.eq.s32.totalorder %s73, 0
      %s76 = sadd.s32 %s75, 1
      %s77 = scalar_select %p74, %s75, %s76
      %p80 = pneg %p74
      %p81 = scmp.eq.s32.totalorder %s19, 15
      %p82 = por %p80, %p81
      %p83 = scmp.ne.s32.totalorder %s75, %s78
      %p84 = scmp.eq.s32.totalorder %s19, 0
      %p85 = por %p83, %p84
      %p86 = scmp.ne.s32.totalorder %s75, %s78
      %p87 = scmp.eq.s32.totalorder %s24, 15
      %p88 = por %p86, %p87
      %p89 = scmp.ne.s32.totalorder %s78, %s79
      %p90 = scmp.eq.s32.totalorder %s24, 0
      %p91 = por %p89, %p90
      %p92 = scmp.ne.s32.totalorder %s78, %s79
      %p93 = scmp.eq.s32.totalorder %s25, 15
      %p94 = por %p92, %p93
      %p96 = scmp.ne.s32.totalorder %s79, %s95
      %p97 = scmp.eq.s32.totalorder %s25, 0
      %p98 = por %p96, %p97
      %s99 = smul.u32 %s26, 2
      %s100 = sadd.s32 %s99, %s27
      %s101 = smul.u32 %s45, 2
      %s102 = sadd.s32 %s101, %s41
      %s103 = ssub.s32 %s100, %s102
      %p104 = scmp.eq.s32.totalorder %s103, 0
      %s106 = sadd.s32 %s105, 1
      %s107 = scalar_select %p104, %s105, %s106
      %p110 = pneg %p104
      %p111 = scmp.eq.s32.totalorder %s19, 15
      %p112 = por %p110, %p111
      %p113 = scmp.ne.s32.totalorder %s105, %s108
      %p114 = scmp.eq.s32.totalorder %s19, 0
      %p115 = por %p113, %p114
      %p116 = scmp.ne.s32.totalorder %s105, %s108
      %p117 = scmp.eq.s32.totalorder %s24, 15
      %p118 = por %p116, %p117
      %p119 = scmp.ne.s32.totalorder %s108, %s109
      %p120 = scmp.eq.s32.totalorder %s24, 0
      %p121 = por %p119, %p120
      %p122 = scmp.ne.s32.totalorder %s108, %s109
      %p123 = scmp.eq.s32.totalorder %s25, 15
      %p124 = por %p122, %p123
      %p126 = scmp.ne.s32.totalorder %s109, %s125
      %p127 = scmp.eq.s32.totalorder %s25, 0
      %p128 = por %p126, %p127
      %s130 = sadd.s32 %s129, 1
      %p133 = scmp.eq.s32.totalorder %s19, 15
      %p134 = scmp.ne.s32.totalorder %s129, %s131
      %p135 = scmp.eq.s32.totalorder %s19, 0
      %p136 = por %p134, %p135
      %p137 = scmp.ne.s32.totalorder %s129, %s131
      %p138 = scmp.eq.s32.totalorder %s24, 15
      %p139 = por %p137, %p138
      %p140 = scmp.ne.s32.totalorder %s131, %s132
      %p141 = scmp.eq.s32.totalorder %s24, 0
      %p142 = por %p140, %p141
      %p143 = scmp.ne.s32.totalorder %s131, %s132
      %p144 = scmp.eq.s32.totalorder %s25, 15
      %p145 = por %p143, %p144
      %p147 = scmp.ne.s32.totalorder %s132, %s146
      %p148 = scmp.eq.s32.totalorder %s25, 0
      %p149 = por %p147, %p148
      %s150 = ssub.s32 %s26, %s45
      %p151 = scmp.eq.s32.totalorder %s150, 0
      %s153 = sadd.s32 %s152, 1
      %s154 = scalar_select %p151, %s152, %s153
      %p157 = pneg %p151
      %p158 = scmp.eq.s32.totalorder %s19, 15
      %p159 = por %p157, %p158
      %p160 = scmp.ne.s32.totalorder %s152, %s155
      %p161 = scmp.eq.s32.totalorder %s19, 0
      %p162 = por %p160, %p161
      %p163 = scmp.ne.s32.totalorder %s152, %s155
      %p164 = scmp.eq.s32.totalorder %s24, 15
      %p165 = por %p163, %p164
      %p166 = scmp.ne.s32.totalorder %s155, %s156
      %p167 = scmp.eq.s32.totalorder %s24, 0
      %p168 = por %p166, %p167
      %p169 = scmp.ne.s32.totalorder %s155, %s156
      %p170 = scmp.eq.s32.totalorder %s25, 15
      %p171 = por %p169, %p170
      %p173 = scmp.ne.s32.totalorder %s156, %s172
      %p174 = scmp.eq.s32.totalorder %s25, 0
      %p175 = por %p173, %p174
      %s176 = ssub.s32 %s26, %s45
      %p177 = scmp.eq.s32.totalorder %s176, 0
      %s179 = sadd.s32 %s178, 1
      %s180 = scalar_select %p177, %s178, %s179
      %p183 = pneg %p177
      %p184 = scmp.eq.s32.totalorder %s19, 15
      %p185 = por %p183, %p184
      %p186 = scmp.ne.s32.totalorder %s178, %s181
      %p187 = scmp.eq.s32.totalorder %s19, 0
      %p188 = por %p186, %p187
      %p189 = scmp.ne.s32.totalorder %s178, %s181
      %p190 = scmp.eq.s32.totalorder %s24, 15
      %p191 = por %p189, %p190
      %p192 = scmp.ne.s32.totalorder %s181, %s182
      %p193 = scmp.eq.s32.totalorder %s24, 0
      %p194 = por %p192, %p193
      %p195 = scmp.ne.s32.totalorder %s181, %s182
      %p196 = scmp.eq.s32.totalorder %s25, 15
      %p197 = por %p195, %p196
      %p199 = scmp.ne.s32.totalorder %s182, %s198
      %p200 = scmp.eq.s32.totalorder %s25, 0
      %p201 = por %p199, %p200
      %p202 = scmp.le.s32.totalorder 1, %s19
      %p203 = scmp.lt.s32.totalorder %s19, 17
      %p204 = pnand %p202, %p203
      %p205 = pneg %p204
      // Predicated region
      $region9: #{_dino_loss_forward.1} parent=5 // pred_check
        _
      $region10: #{_dino_loss_forward.1} parent=5 // pred_check_branch
        %207 = sbr.rel (%p204) target = $region12
      $region11: #{_dino_loss_forward.1} parent=5 // pred_region
        %s208 = ssub.s32 %s19, 1
        // Predicated region
        $region13: #{_dino_loss_forward.1} parent=11 // pred_check
          %p209 = pneg %p59
        $region14: #{_dino_loss_forward.1} parent=11 // pred_check_branch
          %211 = sbr.rel (%p209) target = $region16
        $region15: #{_dino_loss_forward.1} parent=11 // pred_region
          _
        $region16: #{_dino_loss_forward.1} parent=11 // pred_fallthru
          _
        // Predicated region
        $region17: #{_dino_loss_forward.1} parent=11 // pred_check
          %p212 = pneg %p142
        $region18: #{_dino_loss_forward.1} parent=11 // pred_check_branch
          %214 = sbr.rel (%p212) target = $region20
        $region19: #{_dino_loss_forward.1} parent=11 // pred_region
          _
        $region20: #{_dino_loss_forward.1} parent=11 // pred_fallthru
          _
      $region12: #{_dino_loss_forward.1} parent=5 // pred_fallthru
        _
      %p215 = scmp.lt.s32.totalorder %s19, 16
      // Predicated region
      $region21: #{_dino_loss_forward.1} parent=5 // pred_check
        %p216 = pneg %p215
      $region22: #{_dino_loss_forward.1} parent=5 // pred_check_branch
        %218 = sbr.rel (%p216) target = $region24
      $region23: #{_dino_loss_forward.1} parent=5 // pred_region
        // Predicated region
        $region25: #{_dino_loss_forward.1} parent=23 // pred_check
          %p219 = pneg %p85
        $region26: #{_dino_loss_forward.1} parent=23 // pred_check_branch
          %221 = sbr.rel (%p219) target = $region28
        $region27: #{_dino_loss_forward.1} parent=23 // pred_region
          %s222 = sand.u32 %s75, 1
          %s223 = scalar_lea.sflag [#allocation6], %s222
          %s224 = sand.u32 %s75, 1
          %s225 = smul.addr %s224, 16
          %s226 = scalar_lea.vmem [#allocation5], %s225
          %s227 = smul.u32 %s26, 2
          %s228 = sadd.s32 %s227, %s27
          %230 = vsyncadd %s223, 0
          %s231 = smul.addr %s228, 2
          %s232 = smul.addr %s28, 8
          %s233 = sadd.s32 %s231, %s232
          %s234 = smul.addr %s233, 8
          %s235 = scalar_lea.hbm %s1, %s234
          %s237 = sshll.u32 %s235, 4
          %s238 = int_to_ptr.hbm [resolvable:$true] %s237
          %s239 = sshll.u32 %s226, 4
          %s240 = int_to_ptr.vmem [resolvable:$true] %s239
          %242 = dma.hbm_to_vmem [thread:$0]  %s238, 256, %s240, %s223
        $region28: #{_dino_loss_forward.1} parent=23 // pred_fallthru
          _
        // Predicated region
        $region29: #{_dino_loss_forward.1} parent=23 // pred_check
          %p243 = pneg %p115
        $region30: #{_dino_loss_forward.1} parent=23 // pred_check_branch
          %245 = sbr.rel (%p243) target = $region32
        $region31: #{_dino_loss_forward.1} parent=23 // pred_region
          %s246 = sand.u32 %s105, 1
          %s247 = scalar_lea.sflag [#allocation8], %s246
          %s248 = sand.u32 %s105, 1
          %s249 = smul.addr %s248, 32
          %s250 = scalar_lea.vmem [#allocation7], %s249
          %s251 = smul.u32 %s26, 2
          %s252 = sadd.s32 %s251, %s27
          %254 = vsyncadd %s247, 0
          %s255 = smul.addr %s252, 2
          %s256 = smul.addr %s255, 8
          %s257 = scalar_lea.hbm %s2, %s256
          %s258 = sshll.u32 %s257, 4
          %s259 = int_to_ptr.hbm [resolvable:$true] %s258
          %s260 = sshll.u32 %s250, 4
          %s261 = int_to_ptr.vmem [resolvable:$true] %s260
          %266 = dma.hbm_to_vmem [thread:$0]  %s259, 512, %s261, %s247, 1024, 256, 16
        $region32: #{_dino_loss_forward.1} parent=23 // pred_fallthru
          _
      $region24: #{_dino_loss_forward.1} parent=5 // pred_fallthru
        _
      %p267 = scmp.le.s32.totalorder 1, %s19
      %p268 = scmp.lt.s32.totalorder %s19, 17
      %p269 = pnand %p267, %p268
      %p270 = pneg %p269
      // Predicated region
      $region33: #{_dino_loss_forward.1} parent=5 // pred_check
        _
      $region34: #{_dino_loss_forward.1} parent=5 // pred_check_branch
        %272 = sbr.rel (%p269) target = $region36
      $region35: #{_dino_loss_forward.1} parent=5 // pred_region
        %s273 = ssub.s32 %s19, 1
        %s274 = sand.u32 %s78, 1
        %s275 = scalar_lea.sflag [#allocation6], %s274
        %s276 = sand.u32 %s78, 1
        %s277 = smul.addr %s276, 16
        %s278 = scalar_lea.vmem [#allocation5], %s277
        // Predicated region
        $region37: #{_dino_loss_forward.1} parent=35 // pred_check
          %p279 = pneg %p91
        $region38: #{_dino_loss_forward.1} parent=35 // pred_check_branch
          %281 = sbr.rel (%p279) target = $region40
        $region39: #{_dino_loss_forward.1} parent=35 // pred_region
          %283 = dma.done %s275, 256
        $region40: #{_dino_loss_forward.1} parent=35 // pred_fallthru
          _
        %s284 = sand.u32 %s108, 1
        %s285 = scalar_lea.sflag [#allocation8], %s284
        %s286 = sand.u32 %s108, 1
        %s287 = smul.addr %s286, 32
        %s288 = scalar_lea.vmem [#allocation7], %s287
        // Predicated region
        $region41: #{_dino_loss_forward.1} parent=35 // pred_check
          %p289 = pneg %p121
        $region42: #{_dino_loss_forward.1} parent=35 // pred_check_branch
          %291 = sbr.rel (%p289) target = $region44
        $region43: #{_dino_loss_forward.1} parent=35 // pred_region
          %293 = dma.done %s285, 512
        $region44: #{_dino_loss_forward.1} parent=35 // pred_fallthru
          _
        %p294 = pneg %p59
        %p295 = pneg %p56
        %s296 = sand.u32 %s78, 1
        %s297 = scalar_lea.sflag [#allocation6], %s296
        %s298 = sand.u32 %s78, 1
        %s299 = smul.addr %s298, 16
        %s300 = scalar_lea.vmem [#allocation5], %s299
        %p301 = pneg %p91
        %p302 = pneg %p88
        %s303 = sand.u32 %s108, 1
        %s304 = scalar_lea.sflag [#allocation8], %s303
        %s305 = sand.u32 %s108, 1
        %s306 = smul.addr %s305, 32
        %s307 = scalar_lea.vmem [#allocation7], %s306
        %p308 = pneg %p121
        %p309 = pneg %p118
        %p310 = pneg %p142
        %p311 = pneg %p139
        %p312 = pneg %p168
        %p313 = pneg %p165
        %p314 = scmp.lt.s32.totalorder %s29, 1
        %s315 = scalar_select %p314, %s29, 1
        %s316 = scalar_lea.vmem %s4, %s315
        %p317 = pneg %p194
        %p318 = pneg %p191
        %p319 = scmp.lt.s32.totalorder %s29, 1
        %s320 = scalar_select %p319, %s29, 1
        %s321 = smul.addr %s320, 2
        %s322 = scalar_lea.vmem %s5, %s321
        %s323 = smul.u32 %s29, 2
        %s324 = sadd.s32 %s323, %s30
        %s325 = smul.u32 %s29, 2
        %s326 = sadd.s32 %s325, %s30
        %p327 = scmp.lt.s32.totalorder %s29, 1
        %s328 = scalar_select %p327, %s29, 1
        %s329 = scalar_lea.vmem %s4, %s328
        %p330 = scmp.lt.s32.totalorder %s29, 1
        %s331 = scalar_select %p330, %s29, 1
        %s332 = smul.addr %s331, 2
        %s333 = scalar_lea.vmem %s5, %s332
        %v334 = vld [vmem:[%s278] sm:$0xff]
        %v335 = vld [vmem:[%s278 + $0x8] sm:$0xff]
        %v336 = vmul.f32 %v334, 10.0
        %v337 = vmul.f32 %v335, 10.0
        %v338 = vmax.f32 %v336, %v337
        %339 = vmax.xlane.f32.xlu0 %v338
        %v340 = vpop.xlane.xlu0 %339
        %v341 = vsub.f32 %v336, %v340
        %v342 = vsub.f32 %v337, %v340
        %v343 = vmul.f32 %v341, 1.442695
        %v344 = vpow.pop %v343
        %v345 = vmul.f32 %v342, 1.442695
        %v346 = vpow.pop %v345
        %347 = vmatpush.msra.mxu0 1.0
        %348 = vmatpush.msra.mxu0 1.0
        %349 = vmatpush.msra.mxu0 1.0
        %350 = vmatpush.msra.mxu0 1.0
        %351 = vmatpush.msra.mxu0 1.0
        %352 = vmatpush.msra.mxu0 1.0
        %353 = vmatpush.msra.mxu0 1.0
        %354 = vmatpush.msra.mxu0 1.0
        %355 = vmatpush.msra.mxu0 1.0
        %356 = vmatpush.msra.mxu0 1.0
        %357 = vmatpush.msra.mxu0 1.0
        %358 = vmatpush.msra.mxu0 1.0
        %359 = vmatpush.msra.mxu0 1.0
        %360 = vmatpush.msra.mxu0 1.0
        %361 = vmatpush.msra.mxu0 1.0
        %362 = vmatpush.msra.mxu0 1.0
        %363 = vmatmul.f32.gmra.mxu0 %v344
        %v364 = vpop.f32.mrf.mxu0
        %v365 = vadd.f32 0.0, %v364
        %366 = vdwg.mxu0
        %367 = vmatpush.msra.mxu0 1.0
        %368 = vmatpush.msra.mxu0 1.0
        %369 = vmatpush.msra.mxu0 1.0
        %370 = vmatpush.msra.mxu0 1.0
        %371 = vmatpush.msra.mxu0 1.0
        %372 = vmatpush.msra.mxu0 1.0
        %373 = vmatpush.msra.mxu0 1.0
        %374 = vmatpush.msra.mxu0 1.0
        %375 = vmatpush.msra.mxu0 1.0
        %376 = vmatpush.msra.mxu0 1.0
        %377 = vmatpush.msra.mxu0 1.0
        %378 = vmatpush.msra.mxu0 1.0
        %379 = vmatpush.msra.mxu0 1.0
        %380 = vmatpush.msra.mxu0 1.0
        %381 = vmatpush.msra.mxu0 1.0
        %382 = vmatpush.msra.mxu0 1.0
        %383 = vmatmul.f32.gmra.mxu0 %v346
        %v384 = vpop.f32.mrf.mxu0
        %v385 = vadd.f32 %v365, %v384
        %386 = vdwg.mxu0
        %v387 = vlog2.pop %v385
        %v388 = vmul.f32 %v387, 0.6931472
        %390 = vset.pattern.permute.xlu0 0
        %391 = vperm.xlu0 %390, %v388
        %v392 = vpop.permute.xlu0 %391
        %v394 = vsub.f32 %v341, %v392
        %v395 = vsub.f32 %v342, %v392
        %p396 = scmp.eq.s32.totalorder %s31, 0
        // Predicated region
        $region45: #{_dino_loss_forward.1} parent=35 // pred_check
          %p397 = pneg %p396
        $region46: #{_dino_loss_forward.1} parent=35 // pred_check_branch
          %399 = sbr.rel (%p397) target = $region48
        $region47: #{_dino_loss_forward.1} parent=35 // pred_region
          %400 = vst [vmem:[#allocation2] sm:$0xff] %v394
          %401 = vst [vmem:[#allocation2 + $0x8] sm:$0xff] %v395
          %402 = vst [vmem:[#allocation3] sm:$0xff] %v394
          %403 = vst [vmem:[#allocation3 + $0x8] sm:$0xff] %v395
        $region48: #{_dino_loss_forward.1} parent=35 // pred_fallthru
          _
        %p404 = scmp.gt.s32.totalorder %s31, 0
        // Predicated region
        $region49: #{_dino_loss_forward.1} parent=35 // pred_check
          %p405 = pneg %p404
        $region50: #{_dino_loss_forward.1} parent=35 // pred_check_branch
          %407 = sbr.rel (%p405) target = $region52
        $region51: #{_dino_loss_forward.1} parent=35 // pred_region
          %v408 = vld [vmem:[#allocation2] sm:$0xff]
          %v409 = vld [vmem:[#allocation2 + $0x8] sm:$0xff]
          %v410 = vadd.f32 %v408, %v394
          %v411 = vadd.f32 %v409, %v395
          %412 = vst [vmem:[#allocation2] sm:$0xff] %v410
          %413 = vst [vmem:[#allocation2 + $0x8] sm:$0xff] %v411
        $region52: #{_dino_loss_forward.1} parent=35 // pred_fallthru
          _
        %p414 = scmp.eq.s32.totalorder %s31, 1
        // Predicated region
        $region53: #{_dino_loss_forward.1} parent=35 // pred_check
          %p415 = pneg %p414
        $region54: #{_dino_loss_forward.1} parent=35 // pred_check_branch
          %417 = sbr.rel (%p415) target = $region56
        $region55: #{_dino_loss_forward.1} parent=35 // pred_region
          %s418 = scalar_lea.vmem [#allocation3], 16
          %419 = vst [vmem:[%s418] sm:$0xff] %v394
          %420 = vst [vmem:[%s418 + $0x8] sm:$0xff] %v395
        $region56: #{_dino_loss_forward.1} parent=35 // pred_fallthru
          _
        %p421 = scmp.eq.s32.totalorder %s30, 0
        %p422 = scmp.eq.s32.totalorder %s31, 3
        %p423 = pnand %p421, %p422
        %p424 = pneg %p423
        // Predicated region
        $region57: #{_dino_loss_forward.1} parent=35 // pred_check
          _
        $region58: #{_dino_loss_forward.1} parent=35 // pred_check_branch
          %426 = sbr.rel (%p423) target = $region60
        $region59: #{_dino_loss_forward.1} parent=35 // pred_region
          %vm427 = vcmask 0
          %428 = vst.msk [vmem:[%s329] sm:$0x1] %vm427, 0.0
          %v429 = vlaneseq
          %vm430 = vcmp.ge.s32.totalorder %v429, 0
          %vm431 = vcmp.lt.s32.totalorder %v429, 256
          %vm432 = vmand %vm430, %vm431
          %433 = vst.msk [vmem:[%s333] sm:$0x3] %vm432, 0.0
        $region60: #{_dino_loss_forward.1} parent=35 // pred_fallthru
          _
        // Predicated region
        $region61: #{_dino_loss_forward.1} parent=35 // pred_check
          %p434 = pneg %p422
        $region62: #{_dino_loss_forward.1} parent=35 // pred_check_branch
          %436 = sbr.rel (%p434) target = $region64
        $region63: #{_dino_loss_forward.1} parent=35 // pred_region
          %s437 = sld [smem:[#allocation4]]
          %v438 = vld [vmem:[%s3] sm:$0x3]
          %v439 = vld [vmem:[#allocation2] sm:$0xff]
          %v440 = vld [vmem:[#allocation2 + $0x8] sm:$0xff]
          %v441 = vld [vmem:[%s288] sm:$0xff]
          %v442 = vld [vmem:[%s288 + $0x8] sm:$0xff]
          %v443 = vrot.slane %v441, 4
          %v444 = vadd.f32 %v441, %v443
          %v445 = vrot.slane %v444, 2
          %v446 = vadd.f32 %v444, %v445
          %v447 = vrot.slane %v446, 1
          %v448 = vadd.f32 %v446, %v447
          %v449 = vrot.slane %v442, 4
          %v450 = vadd.f32 %v442, %v449
          %v451 = vrot.slane %v450, 2
          %v452 = vadd.f32 %v450, %v451
          %v453 = vrot.slane %v452, 1
          %v454 = vadd.f32 %v452, %v453
          %v455 = vadd.f32 %v448, 0.0
          %v456 = vadd.f32 %v454, 0.0
          %v458 = vperm.slane %v438, 0
          %v459 = vperm.slane %v438, 1
          %v462 = vsub.f32 %v441, %v458
          %v463 = vsub.f32 %v442, %v459
          %v464 = vstv %s437
          %v465 = vmul.f32 %v462, %v464
          %v466 = vmul.f32 %v463, %v464
          %v467 = vmax.f32 %v465, %v466
          %468 = vmax.xlane.f32.xlu0 %v467
          %v469 = vpop.xlane.xlu0 %468
          %v470 = vsub.f32 %v465, %v469
          %v471 = vsub.f32 %v466, %v469
          %v472 = vmul.f32 %v470, 1.442695
          %v473 = vpow.pop %v472
          %v474 = vmul.f32 %v471, 1.442695
          %v475 = vpow.pop %v474
          %476 = vmatpush.msra.mxu0 1.0
          %477 = vmatpush.msra.mxu0 1.0
          %478 = vmatpush.msra.mxu0 1.0
          %479 = vmatpush.msra.mxu0 1.0
          %480 = vmatpush.msra.mxu0 1.0
          %481 = vmatpush.msra.mxu0 1.0
          %482 = vmatpush.msra.mxu0 1.0
          %483 = vmatpush.msra.mxu0 1.0
          %484 = vmatpush.msra.mxu0 1.0
          %485 = vmatpush.msra.mxu0 1.0
          %486 = vmatpush.msra.mxu0 1.0
          %487 = vmatpush.msra.mxu0 1.0
          %488 = vmatpush.msra.mxu0 1.0
          %489 = vmatpush.msra.mxu0 1.0
          %490 = vmatpush.msra.mxu0 1.0
          %491 = vmatpush.msra.mxu0 1.0
          %492 = vmatmul.f32.gmra.mxu0 %v473
          %v493 = vpop.f32.mrf.mxu0
          %v494 = vadd.f32 0.0, %v493
          %495 = vdwg.mxu0
          %496 = vmatpush.msra.mxu0 1.0
          %497 = vmatpush.msra.mxu0 1.0
          %498 = vmatpush.msra.mxu0 1.0
          %499 = vmatpush.msra.mxu0 1.0
          %500 = vmatpush.msra.mxu0 1.0
          %501 = vmatpush.msra.mxu0 1.0
          %502 = vmatpush.msra.mxu0 1.0
          %503 = vmatpush.msra.mxu0 1.0
          %504 = vmatpush.msra.mxu0 1.0
          %505 = vmatpush.msra.mxu0 1.0
          %506 = vmatpush.msra.mxu0 1.0
          %507 = vmatpush.msra.mxu0 1.0
          %508 = vmatpush.msra.mxu0 1.0
          %509 = vmatpush.msra.mxu0 1.0
          %510 = vmatpush.msra.mxu0 1.0
          %511 = vmatpush.msra.mxu0 1.0
          %512 = vmatmul.f32.gmra.mxu0 %v475
          %v513 = vpop.f32.mrf.mxu0
          %v514 = vadd.f32 %v494, %v513
          %515 = vdwg.mxu0
          %v516 = vld [vmem:[#allocation3] sm:$0xff]
          %v517 = vld [vmem:[#allocation3 + $0x8] sm:$0xff]
          %v518 = vsub.f32 %v516, %v439
          %v519 = vsub.f32 %v517, %v440
          %v520 = vmul.f32 %v473, %v518
          %v521 = vmul.f32 %v475, %v519
          %v522 = vadd.f32 %v520, %v521
          %523 = vadd.xlane.f32.xlu0 %v522
          %v524 = vpop.xlane.xlu0 %523
          %v525 = vrcp.pop %v514
          %v526 = vmul.f32 %v514, %v525
          %v527 = vsub.f32 1.0, %v526
          %v528 = vmul.f32 %v525, %v527
          %v529 = vadd.f32 %v525, %v528
          %vm530 = vweird.f32 %v514
          %vm531 = vweird.f32 %v525
          %vm532 = vmor %vm530, %vm531
          %v533 = vsel %vm532, %v525, %v529
          %v534 = vand.u32 2147483647, %v514
          %vm535 = vcmp.eq.f32.partialorder %v534, 8.507059e+37
          %v536 = vand.u32 %v514, 2147483648
          %v537 = vor.u32 1.1754944e-38, %v536
          %v538 = vsel %vm535, %v537, %v533
          %v539 = vmul.f32 %v524, %v538
          %vm540 = vcmask 7168
          %v541 = vsel %vm540, %v539, 0.0
          %542 = vadd.xlane.f32.xlu0 %v541
          %v543 = vpop.xlane.xlu0 %542
          %v544 = vrot.slane %v543, 4
          %v545 = vadd.f32 %v543, %v544
          %v546 = vrot.slane %v545, 2
          %v547 = vadd.f32 %v545, %v546
          %v548 = vrot.slane %v547, 1
          %v549 = vadd.f32 %v547, %v548
          %s550 = vtos %v549
          %s551 = sadd.f32 %s550, 0.0
          %s552 = scalar_lea.vmem %s288, 16 [#allocation7]
          %v553 = vld [vmem:[%s552] sm:$0xff]
          %v554 = vld [vmem:[%s552 + $0x8] sm:$0xff]
          %v555 = vrot.slane %v553, 4
          %v556 = vadd.f32 %v553, %v555
          %v557 = vrot.slane %v556, 2
          %v558 = vadd.f32 %v556, %v557
          %v559 = vrot.slane %v558, 1
          %v560 = vadd.f32 %v558, %v559
          %v561 = vrot.slane %v554, 4
          %v562 = vadd.f32 %v554, %v561
          %v563 = vrot.slane %v562, 2
          %v564 = vadd.f32 %v562, %v563
          %v565 = vrot.slane %v564, 1
          %v566 = vadd.f32 %v564, %v565
          %v567 = vadd.f32 %v455, %v560
          %v568 = vadd.f32 %v456, %v566
          %v569 = vsub.f32 %v553, %v458
          %v570 = vsub.f32 %v554, %v459
          %v571 = vmul.f32 %v569, %v464
          %v572 = vmul.f32 %v570, %v464
          %v573 = vmax.f32 %v571, %v572
          %574 = vmax.xlane.f32.xlu0 %v573
          %v575 = vpop.xlane.xlu0 %574
          %v576 = vsub.f32 %v571, %v575
          %v577 = vsub.f32 %v572, %v575
          %v578 = vmul.f32 %v576, 1.442695
          %v579 = vpow.pop %v578
          %v580 = vmul.f32 %v577, 1.442695
          %v581 = vpow.pop %v580
          %582 = vmatpush.msra.mxu0 1.0
          %583 = vmatpush.msra.mxu0 1.0
          %584 = vmatpush.msra.mxu0 1.0
          %585 = vmatpush.msra.mxu0 1.0
          %586 = vmatpush.msra.mxu0 1.0
          %587 = vmatpush.msra.mxu0 1.0
          %588 = vmatpush.msra.mxu0 1.0
          %589 = vmatpush.msra.mxu0 1.0
          %590 = vmatpush.msra.mxu0 1.0
          %591 = vmatpush.msra.mxu0 1.0
          %592 = vmatpush.msra.mxu0 1.0
          %593 = vmatpush.msra.mxu0 1.0
          %594 = vmatpush.msra.mxu0 1.0
          %595 = vmatpush.msra.mxu0 1.0
          %596 = vmatpush.msra.mxu0 1.0
          %597 = vmatpush.msra.mxu0 1.0
          %598 = vmatmul.f32.gmra.mxu0 %v579
          %v599 = vpop.f32.mrf.mxu0
          %v600 = vadd.f32 0.0, %v599
          %601 = vdwg.mxu0
          %602 = vmatpush.msra.mxu0 1.0
          %603 = vmatpush.msra.mxu0 1.0
          %604 = vmatpush.msra.mxu0 1.0
          %605 = vmatpush.msra.mxu0 1.0
          %606 = vmatpush.msra.mxu0 1.0
          %607 = vmatpush.msra.mxu0 1.0
          %608 = vmatpush.msra.mxu0 1.0
          %609 = vmatpush.msra.mxu0 1.0
          %610 = vmatpush.msra.mxu0 1.0
          %611 = vmatpush.msra.mxu0 1.0
          %612 = vmatpush.msra.mxu0 1.0
          %613 = vmatpush.msra.mxu0 1.0
          %614 = vmatpush.msra.mxu0 1.0
          %615 = vmatpush.msra.mxu0 1.0
          %616 = vmatpush.msra.mxu0 1.0
          %617 = vmatpush.msra.mxu0 1.0
          %618 = vmatmul.f32.gmra.mxu0 %v581
          %v619 = vpop.f32.mrf.mxu0
          %v620 = vadd.f32 %v600, %v619
          %621 = vdwg.mxu0
          %s622 = scalar_lea.vmem [#allocation3], 16
          %v623 = vld [vmem:[%s622] sm:$0xff]
          %v624 = vld [vmem:[%s622 + $0x8] sm:$0xff]
          %v625 = vsub.f32 %v623, %v439
          %v626 = vsub.f32 %v624, %v440
          %v627 = vmul.f32 %v579, %v625
          %v628 = vmul.f32 %v581, %v626
          %v629 = vadd.f32 %v627, %v628
          %630 = vadd.xlane.f32.xlu0 %v629
          %v631 = vpop.xlane.xlu0 %630
          %v632 = vrcp.pop %v620
          %v633 = vmul.f32 %v620, %v632
          %v634 = vsub.f32 1.0, %v633
          %v635 = vmul.f32 %v632, %v634
          %v636 = vadd.f32 %v632, %v635
          %vm637 = vweird.f32 %v620
          %vm638 = vweird.f32 %v632
          %vm639 = vmor %vm637, %vm638
          %v640 = vsel %vm639, %v632, %v636
          %v641 = vand.u32 2147483647, %v620
          %vm642 = vcmp.eq.f32.partialorder %v641, 8.507059e+37
          %v643 = vand.u32 %v620, 2147483648
          %v644 = vor.u32 1.1754944e-38, %v643
          %v645 = vsel %vm642, %v644, %v640
          %v646 = vmul.f32 %v631, %v645
          %v647 = vsel %vm540, %v646, 0.0
          %648 = vadd.xlane.f32.xlu0 %v647
          %v649 = vpop.xlane.xlu0 %648
          %v650 = vrot.slane %v649, 4
          %v651 = vadd.f32 %v649, %v650
          %v652 = vrot.slane %v651, 2
          %v653 = vadd.f32 %v651, %v652
          %v654 = vrot.slane %v653, 1
          %v655 = vadd.f32 %v653, %v654
          %s656 = vtos %v655
          %s657 = sadd.f32 %s551, %s656
          %v658 = vld [vmem:[%s329] sm:$0x1]
          %v659 = vstv %s657
          %v660 = vadd.f32 %v658, %v659
          %vm661 = vcmask 0
          %662 = vst.msk [vmem:[%s329] sm:$0x1] %vm661, %v660
          %v663 = vld [vmem:[%s333] sm:$0x3]
          %v666 = vrot.slane %v568, 7
          %vm667 = vcmask 1040384
          %v668 = vsel %vm667, %v567, %v666
          %v670 = vadd.f32 %v663, %v668
          %v671 = vlaneseq
          %vm672 = vcmp.ge.s32.totalorder %v671, 0
          %vm673 = vcmp.lt.s32.totalorder %v671, 256
          %vm674 = vmand %vm672, %vm673
          %675 = vst.msk [vmem:[%s333] sm:$0x3] %vm674, %v670
        $region64: #{_dino_loss_forward.1} parent=35 // pred_fallthru
          _
        %p676 = scmp.lt.s32.totalorder %s29, 1
        %s677 = scalar_select %p676, %s29, 1
        %s678 = scalar_lea.vmem %s4, %s677
        %p679 = scmp.lt.s32.totalorder %s29, 1
        %s680 = scalar_select %p679, %s29, 1
        %s681 = smul.addr %s680, 2
        %s682 = scalar_lea.vmem %s5, %s681
        // Predicated region
        $region65: #{_dino_loss_forward.1} parent=35 // pred_check
          %p683 = pneg %p165
        $region66: #{_dino_loss_forward.1} parent=35 // pred_check_branch
          %685 = sbr.rel (%p683) target = $region68
        $region67: #{_dino_loss_forward.1} parent=35 // pred_region
          _
        $region68: #{_dino_loss_forward.1} parent=35 // pred_fallthru
          _
        // Predicated region
        $region69: #{_dino_loss_forward.1} parent=35 // pred_check
          %p686 = pneg %p191
        $region70: #{_dino_loss_forward.1} parent=35 // pred_check_branch
          %688 = sbr.rel (%p686) target = $region72
        $region71: #{_dino_loss_forward.1} parent=35 // pred_region
          _
        $region72: #{_dino_loss_forward.1} parent=35 // pred_fallthru
          _
      $region36: #{_dino_loss_forward.1} parent=5 // pred_fallthru
        _
      %p689 = scmp.le.s32.totalorder 2, %s19
      // Predicated region
      $region73: #{_dino_loss_forward.1} parent=5 // pred_check
        %p690 = pneg %p689
      $region74: #{_dino_loss_forward.1} parent=5 // pred_check_branch
        %692 = sbr.rel (%p690) target = $region76
      $region75: #{_dino_loss_forward.1} parent=5 // pred_region
        %s693 = ssub.s32 %s19, 2
        // Predicated region
        $region77: #{_dino_loss_forward.1} parent=75 // pred_check
          %p694 = pneg %p171
        $region78: #{_dino_loss_forward.1} parent=75 // pred_check_branch
          %696 = sbr.rel (%p694) target = $region80
        $region79: #{_dino_loss_forward.1} parent=75 // pred_region
          %p697 = scmp.lt.s32.totalorder %s32, 1
          %s698 = scalar_select %p697, %s32, 1
          %s699 = scalar_lea.vmem %s4, %s698
        $region80: #{_dino_loss_forward.1} parent=75 // pred_fallthru
          _
        // Predicated region
        $region81: #{_dino_loss_forward.1} parent=75 // pred_check
          %p700 = pneg %p197
        $region82: #{_dino_loss_forward.1} parent=75 // pred_check_branch
          %702 = sbr.rel (%p700) target = $region84
        $region83: #{_dino_loss_forward.1} parent=75 // pred_region
          %p703 = scmp.lt.s32.totalorder %s32, 1
          %s704 = scalar_select %p703, %s32, 1
          %s705 = smul.addr %s704, 2
          %s706 = scalar_lea.vmem %s5, %s705
        $region84: #{_dino_loss_forward.1} parent=75 // pred_fallthru
          _
      $region76: #{_dino_loss_forward.1} parent=5 // pred_fallthru
        _
    $region6: #{_dino_loss_forward.1} parent=1 // loop_footer
      %s23 = sadd.s32 1, %s19
    $region7: #{_dino_loss_forward.1} parent=1 // loop_footer_branch
      %18 = sbr.rel target = $region3
    $region8: #{_dino_loss_forward.1} parent=1 // loop_exit
      _
    %707 = vsyncpa [#allocation6], 1
    %s708 = scalar_lea.sflag [#allocation6], 1
    %709 = vsyncpa %s708, 1
    %710 = vsyncpa [#allocation8], 1
    %s711 = scalar_lea.sflag [#allocation8], 1
    %712 = vsyncpa %s711, 1

</llo_original>
